<compile_context>
chip_gen: v7x
topology: tpu7x:2x2x1
jax: 0.10.0
libtpu: 0.0.40
codegen_flags: <defaults>
</compile_context>

<pallas_src>
import functools

import jax
import jax.numpy as jnp
from jax.experimental import pallas as pl
from jax.experimental.pallas import tpu as pltpu


def _round_up(n, m):
    return ((n + m - 1) // m) * m


def _cdiv(a, b):
    return -(-a // b)


def _usable_vmem_bytes():
    try:
        cap = int(pltpu.get_tpu_info().vmem_capacity_bytes)
    except Exception:
        cap = 64 * 1024 * 1024  # conservative fallback: v7x has 64 MiB per TC
    # Leave ~25% for compiler scratch: ~48 MiB on 64 MiB parts (v7x),
    # ~96 MiB on 128 MiB parts (v5e/v6e).
    return (cap * 3) // 4


def _choose_row_tile(tokens, d, in_itemsize, out_itemsize, tile_budget_bytes):
    """Per-step row count (multiple of 8) for the (rows, d) layernorm loop."""
    bytes_per_row = d * (in_itemsize + out_itemsize)
    # Largest tile whose double-buffered (in + out) pipeline fits the budget.
    tm_vmem = max(8, ((tile_budget_bytes // (2 * bytes_per_row)) // 8) * 8)
    tm = min(tm_vmem, _round_up(tokens, 8))
    # Split into multiple grid steps when there is enough work: target ~8
    # steps with >= ~1 MiB of input per tile (HBM roofline sweet spot), and
    # accept >= 2 steps down to ~256 KiB tiles so both TensorCores get rows.
    rows_1mib = max(8, _round_up((1 << 20) // (d * in_itemsize), 8))
    rows_min = max(8, _round_up((256 << 10) // (d * in_itemsize), 8))
    if tokens > rows_min:
        steps = max(2, min(8, tokens // rows_1mib))
        tm_split = max(rows_min, _round_up(_cdiv(tokens, steps), 8))
        tm = min(tm, tm_split)
    return max(8, tm)


def _layernorm_kernel(alpha_ref, bias_ref, x_ref, o_ref, *, eps):
    # x_ref: (TM, D) tile of independent rows; alpha/bias: (1,) scalars in SMEM.
    x = x_ref[...].astype(jnp.float32)
    d = x.shape[-1]

    # One-pass row statistics.
    s1 = jnp.sum(x, axis=-1, keepdims=True)
    s2 = jnp.sum(x * x, axis=-1, keepdims=True)
    mean = s1 * (1.0 / d)
    # torch.Tensor.std defaults to the unbiased estimator (divides by N - 1);
    # clamp at 0 to guard against tiny negative cancellation.
    var = jnp.maximum(s2 - mean * s1, 0.0) * (1.0 / (d - 1))
    denom = jnp.sqrt(var) + eps            # eps added to std, matching torch code

    # EUP approximate reciprocal + one Newton-Raphson step (~1e-6 rel error)
    # instead of a VALU divide.
    r = pl.reciprocal(denom, approx=True)
    r = r * (2.0 - denom * r)

    alpha = alpha_ref[0]
    bias = bias_ref[0]
    scale = alpha * r                      # (TM, 1) per-row scale
    shift = bias - mean * scale            # (TM, 1) per-row shift
    o_ref[...] = (x * scale + shift).astype(o_ref.dtype)


def layer_normalization(x, alpha, bias, *, eps=1e-6):
    """LayerNorm over the last axis. x: (..., d); alpha, bias: shape-(1,) scalars."""
    orig_shape = x.shape
    d = orig_shape[-1]
    tokens = 1
    for s in orig_shape[:-1]:
        tokens *= s
    x2d = x.reshape(tokens, d)

    in_itemsize = jnp.dtype(x.dtype).itemsize
    out_itemsize = in_itemsize

    usable_vmem = _usable_vmem_bytes()
    headroom = 4 * 1024 * 1024
    tm = _choose_row_tile(tokens, d, in_itemsize, out_itemsize,
                          usable_vmem - headroom)
    num_blocks = _cdiv(tokens, tm)

    kernel = functools.partial(_layernorm_kernel, eps=float(eps))

    out2d = pl.pallas_call(
        kernel,
        out_shape=jax.ShapeDtypeStruct((tokens, d), x.dtype),
        grid_spec=pltpu.PrefetchScalarGridSpec(
            num_scalar_prefetch=0,
            grid=(num_blocks,),
            in_specs=[
                pl.BlockSpec(memory_space=pltpu.MemorySpace.SMEM),  # alpha (1,)
                pl.BlockSpec(memory_space=pltpu.MemorySpace.SMEM),  # bias  (1,)
                pl.BlockSpec((tm, d), lambda i: (i, 0)),            # x row tile
            ],
            out_specs=pl.BlockSpec((tm, d), lambda i: (i, 0)),
        ),
        compiler_params=pltpu.CompilerParams(
            dimension_semantics=("parallel",),
            vmem_limit_bytes=int(usable_vmem),
        ),
    )(alpha.astype(jnp.float32), bias.astype(jnp.float32), x2d)

    return out2d.reshape(orig_shape)


if __name__ == "__main__":
    # Shapes consistent with the module: (batch, seq, d_model); d_model is a
    # multiple of 128 so output stores are lane-dense (unmasked vst).
    batch, seq, d_model = 2, 8, 128
    eps = 1e-6

    key = jax.random.PRNGKey(0)
    kx, ka, kb = jax.random.split(key, 3)
    x = jax.random.normal(kx, (batch, seq, d_model), dtype=jnp.float32)
    # PyTorch inits alpha=1, bias=0; random scalars make the check non-trivial.
    alpha = jax.random.normal(ka, (1,), dtype=jnp.float32)
    bias = jax.random.normal(kb, (1,), dtype=jnp.float32)

    out = layer_normalization(x, alpha, bias, eps=eps)
    out = jax.block_until_ready(out)

    # Plain-JAX reference matching torch semantics (unbiased std, eps added to std).
    mean = x.mean(axis=-1, keepdims=True)
    std = jnp.std(x, axis=-1, ddof=1, keepdims=True)
    ref = alpha * (x - mean) / (std + eps) + bias
    assert out.shape == x.shape
    assert jnp.allclose(out, ref, atol=2e-5, rtol=2e-5), "mismatch vs reference"

    print("KERNEL_OK")
</pallas_src>

<mosaic_0001>
module attributes {stable_mosaic.version = 11 : i64} {
  func.func @_layernorm_kernel(%arg0: i32, %arg1: memref<1xf32, #tpu.memory_space<smem>>, %arg2: memref<1xf32, #tpu.memory_space<smem>>, %arg3: memref<16x128xf32, #tpu.memory_space<vmem>>, %arg4: memref<16x128xf32, #tpu.memory_space<vmem>>) attributes {dimension_semantics = [#tpu.dimension_semantics<parallel>], iteration_bounds = array<i64: 1>, scalar_prefetch = 0 : i64, scratch_operands = 0 : i64, tpu.core_type = #tpu.core_type<tc>, window_params = [{transform_indices = @transform_0, window_bounds = array<i64: 1>}, {transform_indices = @transform_1, window_bounds = array<i64: 1>}, {transform_indices = @transform_2, window_bounds = array<i64: 16, 128>}, {transform_indices = @transform_3, window_bounds = array<i64: 16, 128>}]} {
    %c0 = arith.constant 0 : index
    %c0_0 = arith.constant 0 : index
    %0 = vector.load %arg3[%c0, %c0_0] : memref<16x128xf32, #tpu.memory_space<vmem>>, vector<16x128xf32>
    %cst = arith.constant dense<0.000000e+00> : vector<16xf32>
    %1 = vector.multi_reduction <add>, %0, %cst [1] : vector<16x128xf32> to vector<16xf32>
    %2 = vector.shape_cast %1 : vector<16xf32> to vector<16x1xf32>
    %3 = arith.mulf %0, %0 : vector<16x128xf32>
    %cst_1 = arith.constant dense<0.000000e+00> : vector<16xf32>
    %4 = vector.multi_reduction <add>, %3, %cst_1 [1] : vector<16x128xf32> to vector<16xf32>
    %5 = vector.shape_cast %4 : vector<16xf32> to vector<16x1xf32>
    %cst_2 = arith.constant 7.812500e-03 : f32
    %6 = vector.broadcast %cst_2 : f32 to vector<16x1xf32>
    %7 = arith.mulf %2, %6 : vector<16x1xf32>
    %8 = arith.mulf %7, %2 : vector<16x1xf32>
    %9 = arith.subf %5, %8 : vector<16x1xf32>
    %cst_3 = arith.constant 0.000000e+00 : f32
    %10 = vector.broadcast %cst_3 : f32 to vector<16x1xf32>
    %11 = arith.maximumf %9, %10 : vector<16x1xf32>
    %cst_4 = arith.constant 0.00787401571 : f32
    %12 = vector.broadcast %cst_4 : f32 to vector<16x1xf32>
    %13 = arith.mulf %11, %12 : vector<16x1xf32>
    %14 = math.sqrt %13 : vector<16x1xf32>
    %cst_5 = arith.constant 9.99999997E-7 : f32
    %15 = vector.broadcast %cst_5 : f32 to vector<16x1xf32>
    %16 = arith.addf %14, %15 : vector<16x1xf32>
    %17 = tpu.reciprocal %16 {approx = true} : vector<16x1xf32> -> vector<16x1xf32>
    %18 = arith.mulf %16, %17 : vector<16x1xf32>
    %cst_6 = arith.constant 2.000000e+00 : f32
    %19 = vector.broadcast %cst_6 : f32 to vector<16x1xf32>
    %20 = arith.subf %19, %18 : vector<16x1xf32>
    %21 = arith.mulf %17, %20 : vector<16x1xf32>
    %c0_7 = arith.constant 0 : index
    %22 = memref.load %arg1[%c0_7] : memref<1xf32, #tpu.memory_space<smem>>
    %c0_8 = arith.constant 0 : index
    %23 = memref.load %arg2[%c0_8] : memref<1xf32, #tpu.memory_space<smem>>
    %24 = vector.broadcast %22 : f32 to vector<16x1xf32>
    %25 = arith.mulf %24, %21 : vector<16x1xf32>
    %26 = arith.mulf %7, %25 : vector<16x1xf32>
    %27 = vector.broadcast %23 : f32 to vector<16x1xf32>
    %28 = arith.subf %27, %26 : vector<16x1xf32>
    %29 = vector.broadcast %25 : vector<16x1xf32> to vector<16x128xf32>
    %30 = arith.mulf %0, %29 : vector<16x128xf32>
    %31 = vector.broadcast %28 : vector<16x1xf32> to vector<16x128xf32>
    %32 = arith.addf %30, %31 : vector<16x128xf32>
    %c0_9 = arith.constant 0 : index
    %c0_10 = arith.constant 0 : index
    %33 = vector.load %arg4[%c0_9, %c0_10] : memref<16x128xf32, #tpu.memory_space<vmem>>, vector<16x128xf32>
    tpu.vector_store %arg4[%c0_9, %c0_10], %32 {strides = array<i32>} : memref<16x128xf32, #tpu.memory_space<vmem>>, vector<16x128xf32>,
    return
  }
  func.func @transform_0(%arg0: i32) -> i32 {
    %c0_i32 = arith.constant 0 : i32
    %c0_i32_0 = arith.constant 0 : i32
    return %c0_i32 : i32
  }
  func.func @transform_1(%arg0: i32) -> i32 {
    %c0_i32 = arith.constant 0 : i32
    %c0_i32_0 = arith.constant 0 : i32
    return %c0_i32 : i32
  }
  func.func @transform_2(%arg0: i32) -> (i32, i32) {
    %c0_i32 = arith.constant 0 : i32
    %c0_i32_0 = arith.constant 0 : i32
    return %arg0, %c0_i32 : i32, i32
  }
  func.func @transform_3(%arg0: i32) -> (i32, i32) {
    %c0_i32 = arith.constant 0 : i32
    %c0_i32_0 = arith.constant 0 : i32
    return %arg0, %c0_i32 : i32, i32
  }
}

</mosaic_0001>

<llo_original>
// kernel: tpu_custom_call.1
$region0: #{tpu_custom_call.1}
  #allocation0 [shape = 'u32[]', space=smem, size = 0x4, offset = 0x4, fixed_abs, tag = 'smem constant byte address 0x4 - core index']
  #allocation1 [shape = 'u32[144,128]{1,0:T(1,128)}', space=vmem, size = 0x12000, scoped, tag = 'internal scratch']
  #allocation2 [shape = 'f32[1]{0:T(128)S(6)}', space=smem, size = 0x200, scoped, tag = 'scoped memory for tpu_custom_call.1']
  #allocation3 [shape = 'f32[1]{0:T(128)S(6)}', space=smem, size = 0x200, scoped, tag = 'scoped memory for tpu_custom_call.1']
  %s0 = inlined_call_operand.<no memory space> [shape: f32[1], index: 0, kind: input, shape index: {}]
  %s1 = inlined_call_operand.<no memory space> [shape: f32[1], index: 1, kind: input, shape index: {}]
  %s2 = inlined_call_operand.hbm [shape: f32[16,128], index: 2, kind: input, shape index: {}]
  %s3 = inlined_call_operand.hbm [shape: f32[16,128], index: 3, kind: output, shape index: {}]
  %s4 = sld [smem:[#allocation0]]
  $region26: #{tpu_custom_call.1} parent=0
    _
  %s6 = ssub.s32 1, %s4
  %s7 = scalar_select 0, %s6, %s4
  %8 = sst [smem:[#allocation2]] %s0
  %9 = sst [smem:[#allocation3]] %s1
  $region1: #{tpu_custom_call.1} parent=0
    #allocation4 [shape = 'u8[8192]{0}', space=vmem, size = 0x2000, scoped, tag = 'input window, operand 2, single buffered']
    #allocation5 [shape = 's32[1]{0}', space=sflag, size = 0x4, scoped, tag = 'scoped memory for tpu_custom_call.1']
    #allocation6 [shape = 's32[1]{0}', space=sflag, size = 0x4, scoped, tag = 'scoped memory for tpu_custom_call.1']
    #allocation7 [shape = 'u8[8192]{0}', space=vmem, size = 0x2000, scoped, tag = 'output window, operand 0, single buffered']
    %10 = vsyncpa [#allocation5], 0
    %11 = vsyncpa [#allocation6], 0
    // Predicated region
    $region2: #{tpu_custom_call.1} parent=1 // pred_check
      _
    $region3: #{tpu_custom_call.1} parent=1 // pred_check_branch
      %13 = sbr.rel (0) target = $region5
    $region4: #{tpu_custom_call.1} parent=1 // pred_region
      _
    $region5: #{tpu_custom_call.1} parent=1 // pred_fallthru
      _
    // Predicated region
    $region6: #{tpu_custom_call.1} parent=1 // pred_check
      _
    $region7: #{tpu_custom_call.1} parent=1 // pred_check_branch
      %15 = sbr.rel (0) target = $region9
    $region8: #{tpu_custom_call.1} parent=1 // pred_region
      _
    $region9: #{tpu_custom_call.1} parent=1 // pred_fallthru
      _
    // Predicated region
    $region10: #{tpu_custom_call.1} parent=1 // pred_check
      _
    $region11: #{tpu_custom_call.1} parent=1 // pred_check_branch
      %17 = sbr.rel (0) target = $region13
    $region12: #{tpu_custom_call.1} parent=1 // pred_region
      %s19 = ssub.s32 256, 256
      %20 = vsyncadd [#allocation5], %s19
      %s21 = sshll.u32 [#allocation4], 4
      %s22 = int_to_ptr.vmem [resolvable:$true] %s21
      %27 = dma.hbm_to_vmem [thread:$0]  %s2, 256, %s22, [#allocation5], 128, 128, 8
    $region13: #{tpu_custom_call.1} parent=1 // pred_fallthru
      _
    // Predicated region
    $region14: #{tpu_custom_call.1} parent=1 // pred_check
      _
    $region15: #{tpu_custom_call.1} parent=1 // pred_check_branch
      %29 = sbr.rel (0) target = $region17
    $region16: #{tpu_custom_call.1} parent=1 // pred_region
      %30 = dma.done [#allocation5], 256
    $region17: #{tpu_custom_call.1} parent=1 // pred_fallthru
      _
    %v31 = vld [vmem:[#allocation4] sm:$0xff]
    %v32 = vld [vmem:[#allocation4 + $0x8] sm:$0xff]
    %33 = vadd.xlane.f32.xlu0 %v31
    %v34 = vpop.xlane.xlu0 %33
    %35 = vadd.xlane.f32.xlu0 %v32
    %v36 = vpop.xlane.xlu0 %35
    %v37 = vmul.f32 %v31, %v31
    %v38 = vmul.f32 %v32, %v32
    %39 = vadd.xlane.f32.xlu0 %v37
    %v40 = vpop.xlane.xlu0 %39
    %41 = vadd.xlane.f32.xlu0 %v38
    %v42 = vpop.xlane.xlu0 %41
    %v43 = vmul.f32 %v34, 0.0078125
    %v44 = vmul.f32 %v36, 0.0078125
    %v45 = vmul.f32 %v43, %v34
    %v46 = vmul.f32 %v44, %v36
    %v47 = vsub.f32 %v40, %v45
    %v48 = vsub.f32 %v42, %v46
    %v49 = vmax.f32 %v47, 0.0
    %v50 = vmax.f32 %v48, 0.0
    %v51 = vmul.f32 %v49, 0.007874016
    %v52 = vmul.f32 %v50, 0.007874016
    %v53 = vrsqrt.pop %v51
    %v54 = vmul.f32 %v51, %v53
    %vm55 = vcmp.eq.f32.partialorder %v51, inf
    %v56 = vsel %vm55, %v51, %v54
    %vm57 = vcmp.eq.f32.partialorder %v51, 0.0
    %v58 = vand.u32 %v51, 2147483648
    %v59 = vsel %vm57, %v58, %v56
    %v60 = vrsqrt.pop %v52
    %v61 = vmul.f32 %v52, %v60
    %vm62 = vcmp.eq.f32.partialorder %v52, inf
    %v63 = vsel %vm62, %v52, %v61
    %vm64 = vcmp.eq.f32.partialorder %v52, 0.0
    %v65 = vand.u32 %v52, 2147483648
    %v66 = vsel %vm64, %v65, %v63
    %v67 = vadd.f32 %v59, 1e-06
    %v68 = vadd.f32 %v66, 1e-06
    %v69 = vrcp.pop %v67
    %v70 = vrcp.pop %v68
    %v71 = vmul.f32 %v67, %v69
    %v72 = vmul.f32 %v68, %v70
    %v73 = vsub.f32 2.0, %v71
    %v74 = vsub.f32 2.0, %v72
    %v75 = vmul.f32 %v69, %v73
    %v76 = vmul.f32 %v70, %v74
    %s77 = sld [smem:[#allocation2]]
    %s78 = sld [smem:[#allocation3]]
    %v79 = vstv %s77
    %v80 = vmul.f32 %v79, %v75
    %v81 = vmul.f32 %v79, %v76
    %v82 = vmul.f32 %v43, %v80
    %v83 = vmul.f32 %v44, %v81
    %v84 = vstv %s78
    %v85 = vsub.f32 %v84, %v82
    %v86 = vsub.f32 %v84, %v83
    %v87 = vmul.f32 %v31, %v80
    %v88 = vmul.f32 %v32, %v81
    %v89 = vadd.f32 %v87, %v85
    %v90 = vadd.f32 %v88, %v86
    %91 = vst [vmem:[#allocation7] sm:$0xff] %v89
    %92 = vst [vmem:[#allocation7 + $0x8] sm:$0xff] %v90
    // Predicated region
    $region18: #{tpu_custom_call.1} parent=1 // pred_check
      _
    $region19: #{tpu_custom_call.1} parent=1 // pred_check_branch
      %94 = sbr.rel (0) target = $region21
    $region20: #{tpu_custom_call.1} parent=1 // pred_region
      %s96 = ssub.s32 256, 256
      %97 = vsyncadd [#allocation6], %s96
      %s98 = sshll.u32 [#allocation7], 4
      %s99 = int_to_ptr.vmem [resolvable:$true] %s98
      %104 = dma.vmem_to_hbm [thread:$0]  %s99, 256, %s3, [#allocation6], 128, 128, 8
    $region21: #{tpu_custom_call.1} parent=1 // pred_fallthru
      _
    // Predicated region
    $region22: #{tpu_custom_call.1} parent=1 // pred_check
      _
    $region23: #{tpu_custom_call.1} parent=1 // pred_check_branch
      %106 = sbr.rel (0) target = $region25
    $region24: #{tpu_custom_call.1} parent=1 // pred_region
      %107 = dma.done [#allocation6], 256
    $region25: #{tpu_custom_call.1} parent=1 // pred_fallthru
      _
    %108 = vsyncpa [#allocation5], 1
    %109 = vsyncpa [#allocation6], 1

</llo_original>
